<compile_context>
chip_gen: v5e
topology: v5e:2x2
jax: 0.10.0
libtpu: 0.0.40
codegen_flags: <defaults>
</compile_context>

<pallas_src>
import jax
import jax.numpy as jnp
from jax.experimental import pallas as pl
from jax.experimental.pallas import tpu as pltpu

HIDDEN = 200      # matches nn.Linear(input_dims, 200)
TM_MAX = 512      # batch-tile cap (near the ~85% HBM-roofline point)
TK_MAX = 1024     # K-tile cap: bounds the (tm, tk) f32 x tile + w1 slice in VMEM


def _cdiv(a, b):
    return (a + b - 1) // b


def _round_up(a, b):
    return _cdiv(a, b) * b


def _k_tiling(d_in):
    """Returns (padded_k, tile_k). Single K step whenever d_in fits TK_MAX."""
    if d_in <= TK_MAX:
        return d_in, d_in
    return _round_up(d_in, TK_MAX), TK_MAX


def encoder_kernel(x_ref, w1_ref, b1_ref, w2_ref, b2_ref, o_ref, h_acc):
    # x_ref : (TM, TK)  f32 (cast to bf16 here)   w1_ref: (TK, Hp) bf16
    # b1_ref: (1, Hp)   f32                       w2_ref: (Hp, L)  bf16
    # b2_ref: (1, L)    f32                       o_ref : (TM, L)  f32
    # h_acc : (TM, Hp)  f32 VMEM scratch (accumulator across the K grid axis)
    k = pl.program_id(1)

    @pl.when(k == 0)
    def _():
        h_acc[...] = jnp.zeros_like(h_acc)

    # In-kernel bf16 cast: x streams from HBM once, as f32 (4 B/elem).
    h_acc[...] += jnp.dot(x_ref[...].astype(jnp.bfloat16), w1_ref[...],
                          preferred_element_type=jnp.float32)

    @pl.when(k == pl.num_programs(1) - 1)
    def _():
        h = jnp.maximum(h_acc[...] + b1_ref[...], 0.0)       # bias + ReLU in f32
        z = jnp.dot(h.astype(jnp.bfloat16), w2_ref[...],     # bf16 MXU path
                    preferred_element_type=jnp.float32)
        o_ref[...] = (z + b2_ref[...]).astype(o_ref.dtype)


def prepare_encoder_params(w1, b1, w2, b2):
    """One-time parameter prep (do NOT call per step).

    w1: (d_in, 200), b1: (200,), w2: (200, latent), b2: (latent,) — all f32.
    Casts weights to bf16 and zero-pads hidden 200 -> 256 (zeros are inert
    through bias+ReLU and the second matmul); pads d_in up to a K-tile
    multiple when d_in > TK_MAX.
    """
    d_in, hidden = w1.shape
    latent = w2.shape[1]

    hp = _round_up(hidden, 128)
    if hp != hidden:
        w1 = jnp.pad(w1, ((0, 0), (0, hp - hidden)))
        b1 = jnp.pad(b1, ((0, hp - hidden),))
        w2 = jnp.pad(w2, ((0, hp - hidden), (0, 0)))

    dk, tk = _k_tiling(d_in)
    if dk != d_in:
        w1 = jnp.pad(w1, ((0, dk - d_in), (0, 0)))

    return {
        "w1": w1.astype(jnp.bfloat16),
        "b1": b1.reshape(1, hp).astype(jnp.float32),
        "w2": w2.astype(jnp.bfloat16),
        "b2": b2.reshape(1, latent).astype(jnp.float32),
        "d_in": int(d_in), "dk": int(dk), "tk": int(tk),
        "hp": int(hp), "latent": int(latent),
    }


def encoder_forward(x_nchw, params, *, tm=None):
    """x_nchw: (B, ...) f32, flattened from dim 1. Returns z: (B, latent) f32."""
    B = x_nchw.shape[0]
    x = x_nchw.reshape(B, -1)                      # torch.flatten(x, start_dim=1)
    d_in = params["d_in"]
    dk, tk = params["dk"], params["tk"]
    hp, latent = params["hp"], params["latent"]
    assert x.shape[1] == d_in, (x.shape, d_in)

    if dk != d_in:
        # Rare path (d_in > TK_MAX): pad K so every K tile is fully valid.
        # TODO(synk): fuse this pad into the input DMA via allow_input_fusion.
        x = jnp.pad(x, ((0, 0), (0, dk - d_in)))
    x = x.astype(jnp.float32)                      # no-op for f32 inputs

    # --- batch tiling: >=2 steps when B > 8 (v7x megacore), minimal padding ---
    if tm is None:
        min_steps = 2 if B > 8 else 1
        n_steps = max(min_steps, _cdiv(B, TM_MAX))
        tm = min(TM_MAX, _round_up(_cdiv(B, n_steps), 8))
    n_i = _cdiv(B, tm)
    n_k = dk // tk

    flops = 2 * B * dk * hp + 2 * B * hp * latent
    bytes_accessed = (B * dk * 4            # x, f32, read once
                      + dk * hp * 2         # w1 bf16
                      + hp * latent * 2     # w2 bf16
                      + hp * 4 + latent * 4  # biases f32
                      + B * latent * 4)     # output f32

    out = pl.pallas_call(
        encoder_kernel,
        out_shape=jax.ShapeDtypeStruct((B, latent), jnp.float32),
        grid=(n_i, n_k),
        in_specs=[
            pl.BlockSpec((tm, tk), lambda i, k: (i, k)),        # x tile (f32)
            pl.BlockSpec((tk, hp), lambda i, k: (k, 0)),        # w1 slice
            pl.BlockSpec((1, hp), lambda i, k: (0, 0)),         # b1 resident
            pl.BlockSpec((hp, latent), lambda i, k: (0, 0)),    # w2 resident
            pl.BlockSpec((1, latent), lambda i, k: (0, 0)),     # b2 resident
        ],
        out_specs=pl.BlockSpec((tm, latent), lambda i, k: (i, 0)),
        scratch_shapes=[pltpu.VMEM((tm, hp), jnp.float32)],     # hidden accumulator
        compiler_params=pltpu.CompilerParams(
            dimension_semantics=("parallel", "arbitrary")),
        cost_estimate=pl.CostEstimate(
            flops=flops, transcendentals=0, bytes_accessed=bytes_accessed),
    )(x, params["w1"], params["b1"], params["w2"], params["b2"])

    return out


def reference_forward(x_nchw, w1, b1, w2, b2):
    x = x_nchw.reshape(x_nchw.shape[0], -1)
    h = jnp.maximum(x @ w1 + b1, 0.0)
    return h @ w2 + b2


if __name__ == "__main__":
    key = jax.random.PRNGKey(0)
    kx, kw1, kb1, kw2, kb2 = jax.random.split(key, 5)

    # Small shapes consistent with the module: input image (2, 4, 16, 16)
    # -> input_dims = 4*16*16 = 1024, hidden = 200, latent_dims = 32.
    B, C, H, W = 2, 4, 16, 16
    input_dims = C * H * W
    latent_dims = 32

    x = jax.random.normal(kx, (B, C, H, W), dtype=jnp.float32)

    # Deterministic PyTorch-style init (uniform, bound 1/sqrt(fan_in)).
    # Weights stored already transposed to (in, out) so the kernel does x @ W.
    bnd1 = 1.0 / jnp.sqrt(float(input_dims))
    bnd2 = 1.0 / jnp.sqrt(float(HIDDEN))
    w1 = jax.random.uniform(kw1, (input_dims, HIDDEN), jnp.float32, -bnd1, bnd1)
    b1 = jax.random.uniform(kb1, (HIDDEN,), jnp.float32, -bnd1, bnd1)
    w2 = jax.random.uniform(kw2, (HIDDEN, latent_dims), jnp.float32, -bnd2, bnd2)
    b2 = jax.random.uniform(kb2, (latent_dims,), jnp.float32, -bnd2, bnd2)

    # One-time parameter prep (bf16 cast + hidden pad), reused across calls.
    params = prepare_encoder_params(w1, b1, w2, b2)

    z = encoder_forward(x, params)
    jax.block_until_ready(z)

    z_ref = reference_forward(x, w1, b1, w2, b2)
    assert z.shape == (B, latent_dims)
    # bf16 weights/activations with f32 accumulation -> slightly looser tolerance.
    max_err = float(jnp.max(jnp.abs(z - z_ref)))
    assert max_err < 5e-2, f"mismatch vs reference, max abs err={max_err}"

    print("KERNEL_OK")
</pallas_src>

<mosaic_0001>
module attributes {stable_mosaic.version = 11 : i64} {
  func.func @encoder_kernel(%arg0: i32, %arg1: i32, %arg2: memref<8x1024xf32, #tpu.memory_space<vmem>>, %arg3: memref<1024x256xbf16, #tpu.memory_space<vmem>>, %arg4: memref<1x256xf32, #tpu.memory_space<vmem>>, %arg5: memref<256x32xbf16, #tpu.memory_space<vmem>>, %arg6: memref<1x32xf32, #tpu.memory_space<vmem>>, %arg7: memref<8x32xf32, #tpu.memory_space<vmem>>, %arg8: memref<8x256xf32, #tpu.memory_space<vmem>>) attributes {dimension_semantics = [#tpu.dimension_semantics<parallel>, #tpu.dimension_semantics<arbitrary>], iteration_bounds = array<i64: 1, 1>, scalar_prefetch = 0 : i64, scratch_operands = 1 : i64, tpu.core_type = #tpu.core_type<tc>, window_params = [{transform_indices = @transform_0, window_bounds = array<i64: 8, 1024>}, {transform_indices = @transform_1, window_bounds = array<i64: 1024, 256>}, {pipeline_mode = #tpu.pipeline_mode<synchronous>, transform_indices = @transform_2, window_bounds = array<i64: 1, 256>}, {pipeline_mode = #tpu.pipeline_mode<synchronous>, transform_indices = @transform_3, window_bounds = array<i64: 256, 32>}, {pipeline_mode = #tpu.pipeline_mode<synchronous>, transform_indices = @transform_4, window_bounds = array<i64: 1, 32>}, {transform_indices = @transform_5, window_bounds = array<i64: 8, 32>}]} {
    %c0_i32 = arith.constant 0 : i32
    %0 = arith.cmpi eq, %arg1, %c0_i32 : i32
    %1 = arith.extui %0 : i1 to i32
    %c0_i32_0 = arith.constant 0 : i32
    %2 = arith.cmpi ne, %1, %c0_i32_0 : i32
    scf.if %2 {
      %cst_10 = arith.constant 0.000000e+00 : f32
      %13 = vector.broadcast %cst_10 : f32 to vector<8x256xf32>
      %c0_11 = arith.constant 0 : index
      %c0_12 = arith.constant 0 : index
      %14 = vector.load %arg8[%c0_11, %c0_12] : memref<8x256xf32, #tpu.memory_space<vmem>>, vector<8x256xf32>
      tpu.vector_store %arg8[%c0_11, %c0_12], %13 {strides = array<i32>} : memref<8x256xf32, #tpu.memory_space<vmem>>, vector<8x256xf32>,
    } else {
    }
    %c0 = arith.constant 0 : index
    %c0_1 = arith.constant 0 : index
    %3 = vector.load %arg8[%c0, %c0_1] : memref<8x256xf32, #tpu.memory_space<vmem>>, vector<8x256xf32>
    %c0_2 = arith.constant 0 : index
    %c0_3 = arith.constant 0 : index
    %4 = vector.load %arg2[%c0_2, %c0_3] : memref<8x1024xf32, #tpu.memory_space<vmem>>, vector<8x1024xf32>
    %5 = arith.truncf %4 : vector<8x1024xf32> to vector<8x1024xbf16>
    %c0_4 = arith.constant 0 : index
    %c0_5 = arith.constant 0 : index
    %6 = vector.load %arg3[%c0_4, %c0_5] : memref<1024x256xbf16, #tpu.memory_space<vmem>>, vector<1024x256xbf16>
    %cst = arith.constant dense<0.000000e+00> : vector<8x256xf32>
    %7 = tpu.matmul %5, %6, %cst {dimension_numbers = #tpu.dot_dimension_numbers<[1], [0], [0], [1], [0, 0, 1, 1], [], []>} : vector<8x1024xbf16>, vector<1024x256xbf16>, vector<8x256xf32> -> vector<8x256xf32>
    %8 = arith.addf %3, %7 : vector<8x256xf32>
    %c0_6 = arith.constant 0 : index
    %c0_7 = arith.constant 0 : index
    %9 = vector.load %arg8[%c0_6, %c0_7] : memref<8x256xf32, #tpu.memory_space<vmem>>, vector<8x256xf32>
    tpu.vector_store %arg8[%c0_6, %c0_7], %8 {strides = array<i32>} : memref<8x256xf32, #tpu.memory_space<vmem>>, vector<8x256xf32>,
    %c0_i32_8 = arith.constant 0 : i32
    %10 = arith.cmpi eq, %arg1, %c0_i32_8 : i32
    %11 = arith.extui %10 : i1 to i32
    %c0_i32_9 = arith.constant 0 : i32
    %12 = arith.cmpi ne, %11, %c0_i32_9 : i32
    scf.if %12 {
      %c0_10 = arith.constant 0 : index
      %c0_11 = arith.constant 0 : index
      %13 = vector.load %arg8[%c0_10, %c0_11] : memref<8x256xf32, #tpu.memory_space<vmem>>, vector<8x256xf32>
      %c0_12 = arith.constant 0 : index
      %c0_13 = arith.constant 0 : index
      %14 = vector.load %arg4[%c0_12, %c0_13] : memref<1x256xf32, #tpu.memory_space<vmem>>, vector<1x256xf32>
      %15 = vector.broadcast %14 : vector<1x256xf32> to vector<8x256xf32>
      %16 = arith.addf %13, %15 : vector<8x256xf32>
      %cst_14 = arith.constant 0.000000e+00 : f32
      %17 = vector.broadcast %cst_14 : f32 to vector<8x256xf32>
      %18 = arith.maximumf %16, %17 : vector<8x256xf32>
      %19 = arith.truncf %18 : vector<8x256xf32> to vector<8x256xbf16>
      %c0_15 = arith.constant 0 : index
      %c0_16 = arith.constant 0 : index
      %20 = vector.load %arg5[%c0_15, %c0_16] : memref<256x32xbf16, #tpu.memory_space<vmem>>, vector<256x32xbf16>
      %cst_17 = arith.constant dense<0.000000e+00> : vector<8x32xf32>
      %21 = tpu.matmul %19, %20, %cst_17 {dimension_numbers = #tpu.dot_dimension_numbers<[1], [0], [0], [1], [0, 0, 1, 1], [], []>} : vector<8x256xbf16>, vector<256x32xbf16>, vector<8x32xf32> -> vector<8x32xf32>
      %c0_18 = arith.constant 0 : index
      %c0_19 = arith.constant 0 : index
      %22 = vector.load %arg6[%c0_18, %c0_19] : memref<1x32xf32, #tpu.memory_space<vmem>>, vector<1x32xf32>
      %23 = vector.broadcast %22 : vector<1x32xf32> to vector<8x32xf32>
      %24 = arith.addf %21, %23 : vector<8x32xf32>
      %c0_20 = arith.constant 0 : index
      %c0_21 = arith.constant 0 : index
      %25 = vector.load %arg7[%c0_20, %c0_21] : memref<8x32xf32, #tpu.memory_space<vmem>>, vector<8x32xf32>
      tpu.vector_store %arg7[%c0_20, %c0_21], %24 {strides = array<i32>} : memref<8x32xf32, #tpu.memory_space<vmem>>, vector<8x32xf32>,
    } else {
    }
    return
  }
  func.func @transform_0(%arg0: i32, %arg1: i32) -> (i32, i32) {
    %c0_i32 = arith.constant 0 : i32
    return %arg0, %arg1 : i32, i32
  }
  func.func @transform_1(%arg0: i32, %arg1: i32) -> (i32, i32) {
    %c0_i32 = arith.constant 0 : i32
    %c0_i32_0 = arith.constant 0 : i32
    return %arg1, %c0_i32 : i32, i32
  }
  func.func @transform_2(%arg0: i32, %arg1: i32) -> (i32, i32) {
    %c0_i32 = arith.constant 0 : i32
    %c0_i32_0 = arith.constant 0 : i32
    %c0_i32_1 = arith.constant 0 : i32
    return %c0_i32, %c0_i32_0 : i32, i32
  }
  func.func @transform_3(%arg0: i32, %arg1: i32) -> (i32, i32) {
    %c0_i32 = arith.constant 0 : i32
    %c0_i32_0 = arith.constant 0 : i32
    %c0_i32_1 = arith.constant 0 : i32
    return %c0_i32, %c0_i32_0 : i32, i32
  }
  func.func @transform_4(%arg0: i32, %arg1: i32) -> (i32, i32) {
    %c0_i32 = arith.constant 0 : i32
    %c0_i32_0 = arith.constant 0 : i32
    %c0_i32_1 = arith.constant 0 : i32
    return %c0_i32, %c0_i32_0 : i32, i32
  }
  func.func @transform_5(%arg0: i32, %arg1: i32) -> (i32, i32) {
    %c0_i32 = arith.constant 0 : i32
    %c0_i32_0 = arith.constant 0 : i32
    return %arg0, %c0_i32 : i32, i32
  }
}

</mosaic_0001>

<llo_original>
// kernel: tpu_custom_call.1
$region0: #{tpu_custom_call.1}
  #allocation0 [shape = 'u32[]', space=smem, size = 0x4, offset = 0x4, fixed_abs, tag = 'smem constant byte address 0x4 - core index']
  #allocation1 [shape = 'u32[72,128]{1,0:T(1,128)}', space=vmem, size = 0x9000, scoped, tag = 'internal scratch']
  #allocation2 [shape = 'f32[8,256]{1,0:T(8,128)}', space=vmem, size = 0x2000, scoped, tag = 'scratch operand']
  %s0 = inlined_call_operand.vmem [shape: f32[2,1024], index: 0, kind: input, shape index: {}]
  %s1 = inlined_call_operand.hbm [shape: bf16[1024,256], index: 1, kind: input, shape index: {}]
  %s2 = inlined_call_operand.vmem [shape: f32[1,256], index: 2, kind: input, shape index: {}]
  %s3 = inlined_call_operand.vmem [shape: bf16[256,32], index: 3, kind: input, shape index: {}]
  %s4 = inlined_call_operand.vmem [shape: f32[1,32], index: 4, kind: input, shape index: {}]
  %s5 = inlined_call_operand.hbm [shape: f32[2,32], index: 5, kind: output, shape index: {}]
  %s6 = sld [smem:[#allocation0]]
  $region42: #{tpu_custom_call.1} parent=0
    _
  %s8 = ssub.s32 1, %s6
  %s9 = scalar_select 0, %s8, %s6
  $region1: #{tpu_custom_call.1} parent=0
    #allocation3 [shape = 'u8[524288]{0}', space=vmem, size = 0x80000, scoped, tag = 'input window, operand 1, single buffered']
    #allocation4 [shape = 's32[1]{0}', space=sflag, size = 0x4, scoped, tag = 'scoped memory for tpu_custom_call.1']
    #allocation5 [shape = 's32[1]{0}', space=sflag, size = 0x4, scoped, tag = 'scoped memory for tpu_custom_call.1']
    #allocation6 [shape = 'u8[4096]{0}', space=vmem, size = 0x1000, scoped, tag = 'output window, operand 0, single buffered']
    %10 = vsyncpa [#allocation4], 0
    %11 = vsyncpa [#allocation5], 0
    // Predicated region
    $region2: #{tpu_custom_call.1} parent=1 // pred_check
      _
    $region3: #{tpu_custom_call.1} parent=1 // pred_check_branch
      %13 = sbr.rel (0) target = $region5
    $region4: #{tpu_custom_call.1} parent=1 // pred_region
      _
    $region5: #{tpu_custom_call.1} parent=1 // pred_fallthru
      _
    // Predicated region
    $region6: #{tpu_custom_call.1} parent=1 // pred_check
      _
    $region7: #{tpu_custom_call.1} parent=1 // pred_check_branch
      %15 = sbr.rel (0) target = $region9
    $region8: #{tpu_custom_call.1} parent=1 // pred_region
      %17 = vsyncadd [#allocation4], 0
      %s18 = sshll.u32 %s1, 4
      %s19 = int_to_ptr.hbm [resolvable:$true] %s18
      %s20 = sshll.u32 [#allocation3], 4
      %s21 = int_to_ptr.vmem [resolvable:$true] %s20
      %26 = dma.hbm_to_vmem [thread:$0]  %s19, 16384, %s21, [#allocation4], 128, 128, 8
    $region9: #{tpu_custom_call.1} parent=1 // pred_fallthru
      _
    // Predicated region
    $region10: #{tpu_custom_call.1} parent=1 // pred_check
      _
    $region11: #{tpu_custom_call.1} parent=1 // pred_check_branch
      %28 = sbr.rel (0) target = $region13
    $region12: #{tpu_custom_call.1} parent=1 // pred_region
      _
    $region13: #{tpu_custom_call.1} parent=1 // pred_fallthru
      _
    // Predicated region
    $region14: #{tpu_custom_call.1} parent=1 // pred_check
      _
    $region15: #{tpu_custom_call.1} parent=1 // pred_check_branch
      %30 = sbr.rel (0) target = $region17
    $region16: #{tpu_custom_call.1} parent=1 // pred_region
      _
    $region17: #{tpu_custom_call.1} parent=1 // pred_fallthru
      _
    // Predicated region
    $region18: #{tpu_custom_call.1} parent=1 // pred_check
      _
    $region19: #{tpu_custom_call.1} parent=1 // pred_check_branch
      %32 = sbr.rel (0) target = $region21
    $region20: #{tpu_custom_call.1} parent=1 // pred_region
      _
    $region21: #{tpu_custom_call.1} parent=1 // pred_fallthru
      _
    // Predicated region
    $region22: #{tpu_custom_call.1} parent=1 // pred_check
      _
    $region23: #{tpu_custom_call.1} parent=1 // pred_check_branch
      %34 = sbr.rel (0) target = $region25
    $region24: #{tpu_custom_call.1} parent=1 // pred_region
      %36 = dma.done [#allocation4], 16384
    $region25: #{tpu_custom_call.1} parent=1 // pred_fallthru
      _
    %p37 = scmp.eq.s32.totalorder 0, 0
    // Predicated region
    $region26: #{tpu_custom_call.1} parent=1 // pred_check
      %p38 = pneg %p37
    $region27: #{tpu_custom_call.1} parent=1 // pred_check_branch
      %40 = sbr.rel (%p38) target = $region29
    $region28: #{tpu_custom_call.1} parent=1 // pred_region
      %41 = vst [vmem:[#allocation2] sm:$0xff] 0.0
      %42 = vst [vmem:[#allocation2 + $0x8] sm:$0xff] 0.0
    $region29: #{tpu_custom_call.1} parent=1 // pred_fallthru
      _
    %v43 = vld [vmem:[#allocation2] sm:$0xff]
    %v44 = vld [vmem:[#allocation2 + $0x8] sm:$0xff]
    %v45 = vld [vmem:[%s0] sm:$0xff]
    %v46 = vld [vmem:[%s0 + $0x8] sm:$0xff]
    %v47 = vld [vmem:[%s0 + $0x10] sm:$0xff]
    %v48 = vld [vmem:[%s0 + $0x18] sm:$0xff]
    %v49 = vld [vmem:[%s0 + $0x20] sm:$0xff]
    %v50 = vld [vmem:[%s0 + $0x28] sm:$0xff]
    %v51 = vld [vmem:[%s0 + $0x30] sm:$0xff]
    %v52 = vld [vmem:[%s0 + $0x38] sm:$0xff]
    %61 = vst [vmem:[#allocation1] ss:$4 sm:$0xff] %v45
    %s62 = scalar_lea.vmem [#allocation1], 1
    %63 = vst [vmem:[%s62] ss:$4 sm:$0xff] %v47
    %s64 = scalar_lea.vmem [#allocation1], 2
    %65 = vst [vmem:[%s64] ss:$4 sm:$0xff] %v49
    %s66 = scalar_lea.vmem [#allocation1], 3
    %67 = vst [vmem:[%s66] ss:$4 sm:$0xff] %v51
    %s68 = scalar_lea.vmem [#allocation1], 32
    %69 = vst [vmem:[%s68] ss:$4 sm:$0xff] %v46
    %s70 = scalar_lea.vmem [#allocation1], 33
    %71 = vst [vmem:[%s70] ss:$4 sm:$0xff] %v48
    %s72 = scalar_lea.vmem [#allocation1], 34
    %73 = vst [vmem:[%s72] ss:$4 sm:$0xff] %v50
    %s74 = scalar_lea.vmem [#allocation1], 35
    %75 = vst [vmem:[%s74] ss:$4 sm:$0xff] %v52
    %v76 = vld.sshfl [vmem:[#allocation1] sm:$0xff pattern:$0x73625140]
    %v77 = vld.sshfl [vmem:[#allocation1 + $0x8] sm:$0xff pattern:$0x73625140]
    %v78 = vld.sshfl [vmem:[#allocation1 + $0x10] sm:$0xff pattern:$0x73625140]
    %v79 = vld.sshfl [vmem:[#allocation1 + $0x18] sm:$0xff pattern:$0x73625140]
    %v80 = vld.sshfl [vmem:[#allocation1 + $0x20] sm:$0xff pattern:$0x73625140]
    %v81 = vld.sshfl [vmem:[#allocation1 + $0x28] sm:$0xff pattern:$0x73625140]
    %v82 = vld.sshfl [vmem:[#allocation1 + $0x30] sm:$0xff pattern:$0x73625140]
    %v83 = vld.sshfl [vmem:[#allocation1 + $0x38] sm:$0xff pattern:$0x73625140]
    %v92 = vpack.c.bf16 %v76, %v76
    %v93 = vpack.c.bf16 %v77, %v77
    %v94 = vpack.c.bf16 %v78, %v78
    %v95 = vpack.c.bf16 %v79, %v79
    %v96 = vpack.c.bf16 %v80, %v80
    %v97 = vpack.c.bf16 %v81, %v81
    %v98 = vpack.c.bf16 %v82, %v82
    %v99 = vpack.c.bf16 %v83, %v83
    %v100 = vld [vmem:[#allocation3] sm:$0xff]
    %v101 = vld [vmem:[#allocation3 + $0x8] sm:$0xff]
    %v102 = vld [vmem:[#allocation3 + $0x10] sm:$0xff]
    %v103 = vld [vmem:[#allocation3 + $0x18] sm:$0xff]
    %v104 = vld [vmem:[#allocation3 + $0x20] sm:$0xff]
    %v105 = vld [vmem:[#allocation3 + $0x28] sm:$0xff]
    %v106 = vld [vmem:[#allocation3 + $0x30] sm:$0xff]
    %v107 = vld [vmem:[#allocation3 + $0x38] sm:$0xff]
    %v108 = vld [vmem:[#allocation3 + $0x40] sm:$0xff]
    %v109 = vld [vmem:[#allocation3 + $0x48] sm:$0xff]
    %v110 = vld [vmem:[#allocation3 + $0x50] sm:$0xff]
    %v111 = vld [vmem:[#allocation3 + $0x58] sm:$0xff]
    %v112 = vld [vmem:[#allocation3 + $0x60] sm:$0xff]
    %v113 = vld [vmem:[#allocation3 + $0x68] sm:$0xff]
    %v114 = vld [vmem:[#allocation3 + $0x70] sm:$0xff]
    %v115 = vld [vmem:[#allocation3 + $0x78] sm:$0xff]
    %v116 = vld [vmem:[#allocation3 + $0x80] sm:$0xff]
    %v117 = vld [vmem:[#allocation3 + $0x88] sm:$0xff]
    %v118 = vld [vmem:[#allocation3 + $0x90] sm:$0xff]
    %v119 = vld [vmem:[#allocation3 + $0x98] sm:$0xff]
    %v120 = vld [vmem:[#allocation3 + $0xa0] sm:$0xff]
    %v121 = vld [vmem:[#allocation3 + $0xa8] sm:$0xff]
    %v122 = vld [vmem:[#allocation3 + $0xb0] sm:$0xff]
    %v123 = vld [vmem:[#allocation3 + $0xb8] sm:$0xff]
    %v124 = vld [vmem:[#allocation3 + $0xc0] sm:$0xff]
    %v125 = vld [vmem:[#allocation3 + $0xc8] sm:$0xff]
    %v126 = vld [vmem:[#allocation3 + $0xd0] sm:$0xff]
    %v127 = vld [vmem:[#allocation3 + $0xd8] sm:$0xff]
    %v128 = vld [vmem:[#allocation3 + $0xe0] sm:$0xff]
    %v129 = vld [vmem:[#allocation3 + $0xe8] sm:$0xff]
    %v130 = vld [vmem:[#allocation3 + $0xf0] sm:$0xff]
    %v131 = vld [vmem:[#allocation3 + $0xf8] sm:$0xff]
    %v132 = vld [vmem:[#allocation3 + $0x100] sm:$0xff]
    %v133 = vld [vmem:[#allocation3 + $0x108] sm:$0xff]
    %v134 = vld [vmem:[#allocation3 + $0x110] sm:$0xff]
    %v135 = vld [vmem:[#allocation3 + $0x118] sm:$0xff]
    %v136 = vld [vmem:[#allocation3 + $0x120] sm:$0xff]
    %v137 = vld [vmem:[#allocation3 + $0x128] sm:$0xff]
    %v138 = vld [vmem:[#allocation3 + $0x130] sm:$0xff]
    %v139 = vld [vmem:[#allocation3 + $0x138] sm:$0xff]
    %v140 = vld [vmem:[#allocation3 + $0x140] sm:$0xff]
    %v141 = vld [vmem:[#allocation3 + $0x148] sm:$0xff]
    %v142 = vld [vmem:[#allocation3 + $0x150] sm:$0xff]
    %v143 = vld [vmem:[#allocation3 + $0x158] sm:$0xff]
    %v144 = vld [vmem:[#allocation3 + $0x160] sm:$0xff]
    %v145 = vld [vmem:[#allocation3 + $0x168] sm:$0xff]
    %v146 = vld [vmem:[#allocation3 + $0x170] sm:$0xff]
    %v147 = vld [vmem:[#allocation3 + $0x178] sm:$0xff]
    %v148 = vld [vmem:[#allocation3 + $0x180] sm:$0xff]
    %v149 = vld [vmem:[#allocation3 + $0x188] sm:$0xff]
    %v150 = vld [vmem:[#allocation3 + $0x190] sm:$0xff]
    %v151 = vld [vmem:[#allocation3 + $0x198] sm:$0xff]
    %v152 = vld [vmem:[#allocation3 + $0x1a0] sm:$0xff]
    %v153 = vld [vmem:[#allocation3 + $0x1a8] sm:$0xff]
    %v154 = vld [vmem:[#allocation3 + $0x1b0] sm:$0xff]
    %v155 = vld [vmem:[#allocation3 + $0x1b8] sm:$0xff]
    %v156 = vld [vmem:[#allocation3 + $0x1c0] sm:$0xff]
    %v157 = vld [vmem:[#allocation3 + $0x1c8] sm:$0xff]
    %v158 = vld [vmem:[#allocation3 + $0x1d0] sm:$0xff]
    %v159 = vld [vmem:[#allocation3 + $0x1d8] sm:$0xff]
    %v160 = vld [vmem:[#allocation3 + $0x1e0] sm:$0xff]
    %v161 = vld [vmem:[#allocation3 + $0x1e8] sm:$0xff]
    %v162 = vld [vmem:[#allocation3 + $0x1f0] sm:$0xff]
    %v163 = vld [vmem:[#allocation3 + $0x1f8] sm:$0xff]
    %v164 = vld [vmem:[#allocation3 + $0x200] sm:$0xff]
    %v165 = vld [vmem:[#allocation3 + $0x208] sm:$0xff]
    %v166 = vld [vmem:[#allocation3 + $0x210] sm:$0xff]
    %v167 = vld [vmem:[#allocation3 + $0x218] sm:$0xff]
    %v168 = vld [vmem:[#allocation3 + $0x220] sm:$0xff]
    %v169 = vld [vmem:[#allocation3 + $0x228] sm:$0xff]
    %v170 = vld [vmem:[#allocation3 + $0x230] sm:$0xff]
    %v171 = vld [vmem:[#allocation3 + $0x238] sm:$0xff]
    %v172 = vld [vmem:[#allocation3 + $0x240] sm:$0xff]
    %v173 = vld [vmem:[#allocation3 + $0x248] sm:$0xff]
    %v174 = vld [vmem:[#allocation3 + $0x250] sm:$0xff]
    %v175 = vld [vmem:[#allocation3 + $0x258] sm:$0xff]
    %v176 = vld [vmem:[#allocation3 + $0x260] sm:$0xff]
    %v177 = vld [vmem:[#allocation3 + $0x268] sm:$0xff]
    %v178 = vld [vmem:[#allocation3 + $0x270] sm:$0xff]
    %v179 = vld [vmem:[#allocation3 + $0x278] sm:$0xff]
    %v180 = vld [vmem:[#allocation3 + $0x280] sm:$0xff]
    %v181 = vld [vmem:[#allocation3 + $0x288] sm:$0xff]
    %v182 = vld [vmem:[#allocation3 + $0x290] sm:$0xff]
    %v183 = vld [vmem:[#allocation3 + $0x298] sm:$0xff]
    %v184 = vld [vmem:[#allocation3 + $0x2a0] sm:$0xff]
    %v185 = vld [vmem:[#allocation3 + $0x2a8] sm:$0xff]
    %v186 = vld [vmem:[#allocation3 + $0x2b0] sm:$0xff]
    %v187 = vld [vmem:[#allocation3 + $0x2b8] sm:$0xff]
    %v188 = vld [vmem:[#allocation3 + $0x2c0] sm:$0xff]
    %v189 = vld [vmem:[#allocation3 + $0x2c8] sm:$0xff]
    %v190 = vld [vmem:[#allocation3 + $0x2d0] sm:$0xff]
    %v191 = vld [vmem:[#allocation3 + $0x2d8] sm:$0xff]
    %v192 = vld [vmem:[#allocation3 + $0x2e0] sm:$0xff]
    %v193 = vld [vmem:[#allocation3 + $0x2e8] sm:$0xff]
    %v194 = vld [vmem:[#allocation3 + $0x2f0] sm:$0xff]
    %v195 = vld [vmem:[#allocation3 + $0x2f8] sm:$0xff]
    %v196 = vld [vmem:[#allocation3 + $0x300] sm:$0xff]
    %v197 = vld [vmem:[#allocation3 + $0x308] sm:$0xff]
    %v198 = vld [vmem:[#allocation3 + $0x310] sm:$0xff]
    %v199 = vld [vmem:[#allocation3 + $0x318] sm:$0xff]
    %v200 = vld [vmem:[#allocation3 + $0x320] sm:$0xff]
    %v201 = vld [vmem:[#allocation3 + $0x328] sm:$0xff]
    %v202 = vld [vmem:[#allocation3 + $0x330] sm:$0xff]
    %v203 = vld [vmem:[#allocation3 + $0x338] sm:$0xff]
    %v204 = vld [vmem:[#allocation3 + $0x340] sm:$0xff]
    %v205 = vld [vmem:[#allocation3 + $0x348] sm:$0xff]
    %v206 = vld [vmem:[#allocation3 + $0x350] sm:$0xff]
    %v207 = vld [vmem:[#allocation3 + $0x358] sm:$0xff]
    %v208 = vld [vmem:[#allocation3 + $0x360] sm:$0xff]
    %v209 = vld [vmem:[#allocation3 + $0x368] sm:$0xff]
    %v210 = vld [vmem:[#allocation3 + $0x370] sm:$0xff]
    %v211 = vld [vmem:[#allocation3 + $0x378] sm:$0xff]
    %v212 = vld [vmem:[#allocation3 + $0x380] sm:$0xff]
    %v213 = vld [vmem:[#allocation3 + $0x388] sm:$0xff]
    %v214 = vld [vmem:[#allocation3 + $0x390] sm:$0xff]
    %v215 = vld [vmem:[#allocation3 + $0x398] sm:$0xff]
    %v216 = vld [vmem:[#allocation3 + $0x3a0] sm:$0xff]
    %v217 = vld [vmem:[#allocation3 + $0x3a8] sm:$0xff]
    %v218 = vld [vmem:[#allocation3 + $0x3b0] sm:$0xff]
    %v219 = vld [vmem:[#allocation3 + $0x3b8] sm:$0xff]
    %v220 = vld [vmem:[#allocation3 + $0x3c0] sm:$0xff]
    %v221 = vld [vmem:[#allocation3 + $0x3c8] sm:$0xff]
    %v222 = vld [vmem:[#allocation3 + $0x3d0] sm:$0xff]
    %v223 = vld [vmem:[#allocation3 + $0x3d8] sm:$0xff]
    %v224 = vld [vmem:[#allocation3 + $0x3e0] sm:$0xff]
    %v225 = vld [vmem:[#allocation3 + $0x3e8] sm:$0xff]
    %v226 = vld [vmem:[#allocation3 + $0x3f0] sm:$0xff]
    %v227 = vld [vmem:[#allocation3 + $0x3f8] sm:$0xff]
    %v356 = vunpack.c.l.b16 %v100
    %v357 = vunpack.c.h.b16 %v100
    %v358 = vunpack.c.l.b16 %v101
    %v359 = vunpack.c.h.b16 %v101
    %v360 = vunpack.c.l.b16 %v102
    %v361 = vunpack.c.h.b16 %v102
    %v362 = vunpack.c.l.b16 %v103
    %v363 = vunpack.c.h.b16 %v103
    %v364 = vunpack.c.l.b16 %v104
    %v365 = vunpack.c.h.b16 %v104
    %v366 = vunpack.c.l.b16 %v105
    %v367 = vunpack.c.h.b16 %v105
    %v368 = vunpack.c.l.b16 %v106
    %v369 = vunpack.c.h.b16 %v106
    %v370 = vunpack.c.l.b16 %v107
    %v371 = vunpack.c.h.b16 %v107
    %v372 = vunpack.c.l.b16 %v108
    %v373 = vunpack.c.h.b16 %v108
    %v374 = vunpack.c.l.b16 %v109
    %v375 = vunpack.c.h.b16 %v109
    %v376 = vunpack.c.l.b16 %v110
    %v377 = vunpack.c.h.b16 %v110
    %v378 = vunpack.c.l.b16 %v111
    %v379 = vunpack.c.h.b16 %v111
    %v380 = vunpack.c.l.b16 %v112
    %v381 = vunpack.c.h.b16 %v112
    %v382 = vunpack.c.l.b16 %v113
    %v383 = vunpack.c.h.b16 %v113
    %v384 = vunpack.c.l.b16 %v114
    %v385 = vunpack.c.h.b16 %v114
    %v386 = vunpack.c.l.b16 %v115
    %v387 = vunpack.c.h.b16 %v115
    %v388 = vunpack.c.l.b16 %v116
    %v389 = vunpack.c.h.b16 %v116
    %v390 = vunpack.c.l.b16 %v117
    %v391 = vunpack.c.h.b16 %v117
    %v392 = vunpack.c.l.b16 %v118
    %v393 = vunpack.c.h.b16 %v118
    %v394 = vunpack.c.l.b16 %v119
    %v395 = vunpack.c.h.b16 %v119
    %v396 = vunpack.c.l.b16 %v120
    %v397 = vunpack.c.h.b16 %v120
    %v398 = vunpack.c.l.b16 %v121
    %v399 = vunpack.c.h.b16 %v121
    %v400 = vunpack.c.l.b16 %v122
    %v401 = vunpack.c.h.b16 %v122
    %v402 = vunpack.c.l.b16 %v123
    %v403 = vunpack.c.h.b16 %v123
    %v404 = vunpack.c.l.b16 %v124
    %v405 = vunpack.c.h.b16 %v124
    %v406 = vunpack.c.l.b16 %v125
    %v407 = vunpack.c.h.b16 %v125
    %v408 = vunpack.c.l.b16 %v126
    %v409 = vunpack.c.h.b16 %v126
    %v410 = vunpack.c.l.b16 %v127
    %v411 = vunpack.c.h.b16 %v127
    %v412 = vunpack.c.l.b16 %v128
    %v413 = vunpack.c.h.b16 %v128
    %v414 = vunpack.c.l.b16 %v129
    %v415 = vunpack.c.h.b16 %v129
    %v416 = vunpack.c.l.b16 %v130
    %v417 = vunpack.c.h.b16 %v130
    %v418 = vunpack.c.l.b16 %v131
    %v419 = vunpack.c.h.b16 %v131
    %v420 = vunpack.c.l.b16 %v132
    %v421 = vunpack.c.h.b16 %v132
    %v422 = vunpack.c.l.b16 %v133
    %v423 = vunpack.c.h.b16 %v133
    %v424 = vunpack.c.l.b16 %v134
    %v425 = vunpack.c.h.b16 %v134
    %v426 = vunpack.c.l.b16 %v135
    %v427 = vunpack.c.h.b16 %v135
    %v428 = vunpack.c.l.b16 %v136
    %v429 = vunpack.c.h.b16 %v136
    %v430 = vunpack.c.l.b16 %v137
    %v431 = vunpack.c.h.b16 %v137
    %v432 = vunpack.c.l.b16 %v138
    %v433 = vunpack.c.h.b16 %v138
    %v434 = vunpack.c.l.b16 %v139
    %v435 = vunpack.c.h.b16 %v139
    %v436 = vunpack.c.l.b16 %v140
    %v437 = vunpack.c.h.b16 %v140
    %v438 = vunpack.c.l.b16 %v141
    %v439 = vunpack.c.h.b16 %v141
    %v440 = vunpack.c.l.b16 %v142
    %v441 = vunpack.c.h.b16 %v142
    %v442 = vunpack.c.l.b16 %v143
    %v443 = vunpack.c.h.b16 %v143
    %v444 = vunpack.c.l.b16 %v144
    %v445 = vunpack.c.h.b16 %v144
    %v446 = vunpack.c.l.b16 %v145
    %v447 = vunpack.c.h.b16 %v145
    %v448 = vunpack.c.l.b16 %v146
    %v449 = vunpack.c.h.b16 %v146
    %v450 = vunpack.c.l.b16 %v147
    %v451 = vunpack.c.h.b16 %v147
    %v452 = vunpack.c.l.b16 %v148
    %v453 = vunpack.c.h.b16 %v148
    %v454 = vunpack.c.l.b16 %v149
    %v455 = vunpack.c.h.b16 %v149
    %v456 = vunpack.c.l.b16 %v150
    %v457 = vunpack.c.h.b16 %v150
    %v458 = vunpack.c.l.b16 %v151
    %v459 = vunpack.c.h.b16 %v151
    %v460 = vunpack.c.l.b16 %v152
    %v461 = vunpack.c.h.b16 %v152
    %v462 = vunpack.c.l.b16 %v153
    %v463 = vunpack.c.h.b16 %v153
    %v464 = vunpack.c.l.b16 %v154
    %v465 = vunpack.c.h.b16 %v154
    %v466 = vunpack.c.l.b16 %v155
    %v467 = vunpack.c.h.b16 %v155
    %v468 = vunpack.c.l.b16 %v156
    %v469 = vunpack.c.h.b16 %v156
    %v470 = vunpack.c.l.b16 %v157
    %v471 = vunpack.c.h.b16 %v157
    %v472 = vunpack.c.l.b16 %v158
    %v473 = vunpack.c.h.b16 %v158
    %v474 = vunpack.c.l.b16 %v159
    %v475 = vunpack.c.h.b16 %v159
    %v476 = vunpack.c.l.b16 %v160
    %v477 = vunpack.c.h.b16 %v160
    %v478 = vunpack.c.l.b16 %v161
    %v479 = vunpack.c.h.b16 %v161
    %v480 = vunpack.c.l.b16 %v162
    %v481 = vunpack.c.h.b16 %v162
    %v482 = vunpack.c.l.b16 %v163
    %v483 = vunpack.c.h.b16 %v163
    %v484 = vunpack.c.l.b16 %v164
    %v485 = vunpack.c.h.b16 %v164
    %v486 = vunpack.c.l.b16 %v165
    %v487 = vunpack.c.h.b16 %v165
    %v488 = vunpack.c.l.b16 %v166
    %v489 = vunpack.c.h.b16 %v166
    %v490 = vunpack.c.l.b16 %v167
    %v491 = vunpack.c.h.b16 %v167
    %v492 = vunpack.c.l.b16 %v168
    %v493 = vunpack.c.h.b16 %v168
    %v494 = vunpack.c.l.b16 %v169
    %v495 = vunpack.c.h.b16 %v169
    %v496 = vunpack.c.l.b16 %v170
    %v497 = vunpack.c.h.b16 %v170
    %v498 = vunpack.c.l.b16 %v171
    %v499 = vunpack.c.h.b16 %v171
    %v500 = vunpack.c.l.b16 %v172
    %v501 = vunpack.c.h.b16 %v172
    %v502 = vunpack.c.l.b16 %v173
    %v503 = vunpack.c.h.b16 %v173
    %v504 = vunpack.c.l.b16 %v174
    %v505 = vunpack.c.h.b16 %v174
    %v506 = vunpack.c.l.b16 %v175
    %v507 = vunpack.c.h.b16 %v175
    %v508 = vunpack.c.l.b16 %v176
    %v509 = vunpack.c.h.b16 %v176
    %v510 = vunpack.c.l.b16 %v177
    %v511 = vunpack.c.h.b16 %v177
    %v512 = vunpack.c.l.b16 %v178
    %v513 = vunpack.c.h.b16 %v178
    %v514 = vunpack.c.l.b16 %v179
    %v515 = vunpack.c.h.b16 %v179
    %v516 = vunpack.c.l.b16 %v180
    %v517 = vunpack.c.h.b16 %v180
    %v518 = vunpack.c.l.b16 %v181
    %v519 = vunpack.c.h.b16 %v181
    %v520 = vunpack.c.l.b16 %v182
    %v521 = vunpack.c.h.b16 %v182
    %v522 = vunpack.c.l.b16 %v183
    %v523 = vunpack.c.h.b16 %v183
    %v524 = vunpack.c.l.b16 %v184
    %v525 = vunpack.c.h.b16 %v184
    %v526 = vunpack.c.l.b16 %v185
    %v527 = vunpack.c.h.b16 %v185
    %v528 = vunpack.c.l.b16 %v186
    %v529 = vunpack.c.h.b16 %v186
    %v530 = vunpack.c.l.b16 %v187
    %v531 = vunpack.c.h.b16 %v187
    %v532 = vunpack.c.l.b16 %v188
    %v533 = vunpack.c.h.b16 %v188
    %v534 = vunpack.c.l.b16 %v189
    %v535 = vunpack.c.h.b16 %v189
    %v536 = vunpack.c.l.b16 %v190
    %v537 = vunpack.c.h.b16 %v190
    %v538 = vunpack.c.l.b16 %v191
    %v539 = vunpack.c.h.b16 %v191
    %v540 = vunpack.c.l.b16 %v192
    %v541 = vunpack.c.h.b16 %v192
    %v542 = vunpack.c.l.b16 %v193
    %v543 = vunpack.c.h.b16 %v193
    %v544 = vunpack.c.l.b16 %v194
    %v545 = vunpack.c.h.b16 %v194
    %v546 = vunpack.c.l.b16 %v195
    %v547 = vunpack.c.h.b16 %v195
    %v548 = vunpack.c.l.b16 %v196
    %v549 = vunpack.c.h.b16 %v196
    %v550 = vunpack.c.l.b16 %v197
    %v551 = vunpack.c.h.b16 %v197
    %v552 = vunpack.c.l.b16 %v198
    %v553 = vunpack.c.h.b16 %v198
    %v554 = vunpack.c.l.b16 %v199
    %v555 = vunpack.c.h.b16 %v199
    %v556 = vunpack.c.l.b16 %v200
    %v557 = vunpack.c.h.b16 %v200
    %v558 = vunpack.c.l.b16 %v201
    %v559 = vunpack.c.h.b16 %v201
    %v560 = vunpack.c.l.b16 %v202
    %v561 = vunpack.c.h.b16 %v202
    %v562 = vunpack.c.l.b16 %v203
    %v563 = vunpack.c.h.b16 %v203
    %v564 = vunpack.c.l.b16 %v204
    %v565 = vunpack.c.h.b16 %v204
    %v566 = vunpack.c.l.b16 %v205
    %v567 = vunpack.c.h.b16 %v205
    %v568 = vunpack.c.l.b16 %v206
    %v569 = vunpack.c.h.b16 %v206
    %v570 = vunpack.c.l.b16 %v207
    %v571 = vunpack.c.h.b16 %v207
    %v572 = vunpack.c.l.b16 %v208
    %v573 = vunpack.c.h.b16 %v208
    %v574 = vunpack.c.l.b16 %v209
    %v575 = vunpack.c.h.b16 %v209
    %v576 = vunpack.c.l.b16 %v210
    %v577 = vunpack.c.h.b16 %v210
    %v578 = vunpack.c.l.b16 %v211
    %v579 = vunpack.c.h.b16 %v211
    %v580 = vunpack.c.l.b16 %v212
    %v581 = vunpack.c.h.b16 %v212
    %v582 = vunpack.c.l.b16 %v213
    %v583 = vunpack.c.h.b16 %v213
    %v584 = vunpack.c.l.b16 %v214
    %v585 = vunpack.c.h.b16 %v214
    %v586 = vunpack.c.l.b16 %v215
    %v587 = vunpack.c.h.b16 %v215
    %v588 = vunpack.c.l.b16 %v216
    %v589 = vunpack.c.h.b16 %v216
    %v590 = vunpack.c.l.b16 %v217
    %v591 = vunpack.c.h.b16 %v217
    %v592 = vunpack.c.l.b16 %v218
    %v593 = vunpack.c.h.b16 %v218
    %v594 = vunpack.c.l.b16 %v219
    %v595 = vunpack.c.h.b16 %v219
    %v596 = vunpack.c.l.b16 %v220
    %v597 = vunpack.c.h.b16 %v220
    %v598 = vunpack.c.l.b16 %v221
    %v599 = vunpack.c.h.b16 %v221
    %v600 = vunpack.c.l.b16 %v222
    %v601 = vunpack.c.h.b16 %v222
    %v602 = vunpack.c.l.b16 %v223
    %v603 = vunpack.c.h.b16 %v223
    %v604 = vunpack.c.l.b16 %v224
    %v605 = vunpack.c.h.b16 %v224
    %v606 = vunpack.c.l.b16 %v225
    %v607 = vunpack.c.h.b16 %v225
    %v608 = vunpack.c.l.b16 %v226
    %v609 = vunpack.c.h.b16 %v226
    %v610 = vunpack.c.l.b16 %v227
    %v611 = vunpack.c.h.b16 %v227
    %v612 = vpack.c.b16 %v358, %v356
    %v613 = vpack.c.b16 %v359, %v357
    %v614 = vpack.c.b16 %v362, %v360
    %v615 = vpack.c.b16 %v363, %v361
    %v616 = vpack.c.b16 %v366, %v364
    %v617 = vpack.c.b16 %v367, %v365
    %v618 = vpack.c.b16 %v370, %v368
    %v619 = vpack.c.b16 %v371, %v369
    %v620 = vpack.c.b16 %v374, %v372
    %v621 = vpack.c.b16 %v375, %v373
    %v622 = vpack.c.b16 %v378, %v376
    %v623 = vpack.c.b16 %v379, %v377
    %v624 = vpack.c.b16 %v382, %v380
    %v625 = vpack.c.b16 %v383, %v381
    %v626 = vpack.c.b16 %v386, %v384
    %v627 = vpack.c.b16 %v387, %v385
    %v628 = vpack.c.b16 %v390, %v388
    %v629 = vpack.c.b16 %v391, %v389
    %v630 = vpack.c.b16 %v394, %v392
    %v631 = vpack.c.b16 %v395, %v393
    %v632 = vpack.c.b16 %v398, %v396
    %v633 = vpack.c.b16 %v399, %v397
    %v634 = vpack.c.b16 %v402, %v400
    %v635 = vpack.c.b16 %v403, %v401
    %v636 = vpack.c.b16 %v406, %v404
    %v637 = vpack.c.b16 %v407, %v405
    %v638 = vpack.c.b16 %v410, %v408
    %v639 = vpack.c.b16 %v411, %v409
    %v640 = vpack.c.b16 %v414, %v412
    %v641 = vpack.c.b16 %v415, %v413
    %v642 = vpack.c.b16 %v418, %v416
    %v643 = vpack.c.b16 %v419, %v417
    %v644 = vpack.c.b16 %v422, %v420
    %v645 = vpack.c.b16 %v423, %v421
    %v646 = vpack.c.b16 %v426, %v424
    %v647 = vpack.c.b16 %v427, %v425
    %v648 = vpack.c.b16 %v430, %v428
    %v649 = vpack.c.b16 %v431, %v429
    %v650 = vpack.c.b16 %v434, %v432
    %v651 = vpack.c.b16 %v435, %v433
    %v652 = vpack.c.b16 %v438, %v436
    %v653 = vpack.c.b16 %v439, %v437
    %v654 = vpack.c.b16 %v442, %v440
    %v655 = vpack.c.b16 %v443, %v441
    %v656 = vpack.c.b16 %v446, %v444
    %v657 = vpack.c.b16 %v447, %v445
    %v658 = vpack.c.b16 %v450, %v448
    %v659 = vpack.c.b16 %v451, %v449
    %v660 = vpack.c.b16 %v454, %v452
    %v661 = vpack.c.b16 %v455, %v453
    %v662 = vpack.c.b16 %v458, %v456
    %v663 = vpack.c.b16 %v459, %v457
    %v664 = vpack.c.b16 %v462, %v460
    %v665 = vpack.c.b16 %v463, %v461
    %v666 = vpack.c.b16 %v466, %v464
    %v667 = vpack.c.b16 %v467, %v465
    %v668 = vpack.c.b16 %v470, %v468
    %v669 = vpack.c.b16 %v471, %v469
    %v670 = vpack.c.b16 %v474, %v472
    %v671 = vpack.c.b16 %v475, %v473
    %v672 = vpack.c.b16 %v478, %v476
    %v673 = vpack.c.b16 %v479, %v477
    %v674 = vpack.c.b16 %v482, %v480
    %v675 = vpack.c.b16 %v483, %v481
    %v676 = vpack.c.b16 %v486, %v484
    %v677 = vpack.c.b16 %v487, %v485
    %v678 = vpack.c.b16 %v490, %v488
    %v679 = vpack.c.b16 %v491, %v489
    %v680 = vpack.c.b16 %v494, %v492
    %v681 = vpack.c.b16 %v495, %v493
    %v682 = vpack.c.b16 %v498, %v496
    %v683 = vpack.c.b16 %v499, %v497
    %v684 = vpack.c.b16 %v502, %v500
    %v685 = vpack.c.b16 %v503, %v501
    %v686 = vpack.c.b16 %v506, %v504
    %v687 = vpack.c.b16 %v507, %v505
    %v688 = vpack.c.b16 %v510, %v508
    %v689 = vpack.c.b16 %v511, %v509
    %v690 = vpack.c.b16 %v514, %v512
    %v691 = vpack.c.b16 %v515, %v513
    %v692 = vpack.c.b16 %v518, %v516
    %v693 = vpack.c.b16 %v519, %v517
    %v694 = vpack.c.b16 %v522, %v520
    %v695 = vpack.c.b16 %v523, %v521
    %v696 = vpack.c.b16 %v526, %v524
    %v697 = vpack.c.b16 %v527, %v525
    %v698 = vpack.c.b16 %v530, %v528
    %v699 = vpack.c.b16 %v531, %v529
    %v700 = vpack.c.b16 %v534, %v532
    %v701 = vpack.c.b16 %v535, %v533
    %v702 = vpack.c.b16 %v538, %v536
    %v703 = vpack.c.b16 %v539, %v537
    %v704 = vpack.c.b16 %v542, %v540
    %v705 = vpack.c.b16 %v543, %v541
    %v706 = vpack.c.b16 %v546, %v544
    %v707 = vpack.c.b16 %v547, %v545
    %v708 = vpack.c.b16 %v550, %v548
    %v709 = vpack.c.b16 %v551, %v549
    %v710 = vpack.c.b16 %v554, %v552
    %v711 = vpack.c.b16 %v555, %v553
    %v712 = vpack.c.b16 %v558, %v556
    %v713 = vpack.c.b16 %v559, %v557
    %v714 = vpack.c.b16 %v562, %v560
    %v715 = vpack.c.b16 %v563, %v561
    %v716 = vpack.c.b16 %v566, %v564
    %v717 = vpack.c.b16 %v567, %v565
    %v718 = vpack.c.b16 %v570, %v568
    %v719 = vpack.c.b16 %v571, %v569
    %v720 = vpack.c.b16 %v574, %v572
    %v721 = vpack.c.b16 %v575, %v573
    %v722 = vpack.c.b16 %v578, %v576
    %v723 = vpack.c.b16 %v579, %v577
    %v724 = vpack.c.b16 %v582, %v580
    %v725 = vpack.c.b16 %v583, %v581
    %v726 = vpack.c.b16 %v586, %v584
    %v727 = vpack.c.b16 %v587, %v585
    %v728 = vpack.c.b16 %v590, %v588
    %v729 = vpack.c.b16 %v591, %v589
    %v730 = vpack.c.b16 %v594, %v592
    %v731 = vpack.c.b16 %v595, %v593
    %v732 = vpack.c.b16 %v598, %v596
    %v733 = vpack.c.b16 %v599, %v597
    %v734 = vpack.c.b16 %v602, %v600
    %v735 = vpack.c.b16 %v603, %v601
    %v736 = vpack.c.b16 %v606, %v604
    %v737 = vpack.c.b16 %v607, %v605
    %v738 = vpack.c.b16 %v610, %v608
    %v739 = vpack.c.b16 %v611, %v609
    %868 = vmatpush.bf16.msra.mxu0 %v626
    %869 = vmatpush.bf16.msra.mxu0 %v624
    %870 = vmatpush.bf16.msra.mxu0 %v622
    %871 = vmatpush.bf16.msra.mxu0 %v620
    %872 = vmatpush.bf16.msra.mxu0 %v618
    %873 = vmatpush.bf16.msra.mxu0 %v616
    %874 = vmatpush.bf16.msra.mxu0 %v614
    %875 = vmatpush.bf16.msra.mxu0 %v612
    %876 = vmatmul.bf16.gmra.mxu0 %v92
    %v877 = vpop.f32.mrf.mxu0
    %v878 = vadd.f32 0.0, %v877
    %v879 = vpop.f32.mrf.mxu0
    %880 = vdwg.mxu0
    %881 = vmatpush.bf16.msra.mxu0 %v642
    %882 = vmatpush.bf16.msra.mxu0 %v640
    %883 = vmatpush.bf16.msra.mxu0 %v638
    %884 = vmatpush.bf16.msra.mxu0 %v636
    %885 = vmatpush.bf16.msra.mxu0 %v634
    %886 = vmatpush.bf16.msra.mxu0 %v632
    %887 = vmatpush.bf16.msra.mxu0 %v630
    %888 = vmatpush.bf16.msra.mxu0 %v628
    %889 = vmatmul.bf16.gmra.mxu0 %v93
    %v890 = vpop.f32.mrf.mxu0
    %v891 = vadd.f32 %v878, %v890
    %v892 = vpop.f32.mrf.mxu0
    %893 = vdwg.mxu0
    %894 = vmatpush.bf16.msra.mxu0 %v658
    %895 = vmatpush.bf16.msra.mxu0 %v656
    %896 = vmatpush.bf16.msra.mxu0 %v654
    %897 = vmatpush.bf16.msra.mxu0 %v652
    %898 = vmatpush.bf16.msra.mxu0 %v650
    %899 = vmatpush.bf16.msra.mxu0 %v648
    %900 = vmatpush.bf16.msra.mxu0 %v646
    %901 = vmatpush.bf16.msra.mxu0 %v644
    %902 = vmatmul.bf16.gmra.mxu0 %v94
    %v903 = vpop.f32.mrf.mxu0
    %v904 = vadd.f32 %v891, %v903
    %v905 = vpop.f32.mrf.mxu0
    %906 = vdwg.mxu0
    %907 = vmatpush.bf16.msra.mxu0 %v674
    %908 = vmatpush.bf16.msra.mxu0 %v672
    %909 = vmatpush.bf16.msra.mxu0 %v670
    %910 = vmatpush.bf16.msra.mxu0 %v668
    %911 = vmatpush.bf16.msra.mxu0 %v666
    %912 = vmatpush.bf16.msra.mxu0 %v664
    %913 = vmatpush.bf16.msra.mxu0 %v662
    %914 = vmatpush.bf16.msra.mxu0 %v660
    %915 = vmatmul.bf16.gmra.mxu0 %v95
    %v916 = vpop.f32.mrf.mxu0
    %v917 = vadd.f32 %v904, %v916
    %v918 = vpop.f32.mrf.mxu0
    %919 = vdwg.mxu0
    %920 = vmatpush.bf16.msra.mxu0 %v690
    %921 = vmatpush.bf16.msra.mxu0 %v688
    %922 = vmatpush.bf16.msra.mxu0 %v686
    %923 = vmatpush.bf16.msra.mxu0 %v684
    %924 = vmatpush.bf16.msra.mxu0 %v682
    %925 = vmatpush.bf16.msra.mxu0 %v680
    %926 = vmatpush.bf16.msra.mxu0 %v678
    %927 = vmatpush.bf16.msra.mxu0 %v676
    %928 = vmatmul.bf16.gmra.mxu0 %v96
    %v929 = vpop.f32.mrf.mxu0
    %v930 = vadd.f32 %v917, %v929
    %v931 = vpop.f32.mrf.mxu0
    %932 = vdwg.mxu0
    %933 = vmatpush.bf16.msra.mxu0 %v706
    %934 = vmatpush.bf16.msra.mxu0 %v704
    %935 = vmatpush.bf16.msra.mxu0 %v702
    %936 = vmatpush.bf16.msra.mxu0 %v700
    %937 = vmatpush.bf16.msra.mxu0 %v698
    %938 = vmatpush.bf16.msra.mxu0 %v696
    %939 = vmatpush.bf16.msra.mxu0 %v694
    %940 = vmatpush.bf16.msra.mxu0 %v692
    %941 = vmatmul.bf16.gmra.mxu0 %v97
    %v942 = vpop.f32.mrf.mxu0
    %v943 = vadd.f32 %v930, %v942
    %v944 = vpop.f32.mrf.mxu0
    %945 = vdwg.mxu0
    %946 = vmatpush.bf16.msra.mxu0 %v722
    %947 = vmatpush.bf16.msra.mxu0 %v720
    %948 = vmatpush.bf16.msra.mxu0 %v718
    %949 = vmatpush.bf16.msra.mxu0 %v716
    %950 = vmatpush.bf16.msra.mxu0 %v714
    %951 = vmatpush.bf16.msra.mxu0 %v712
    %952 = vmatpush.bf16.msra.mxu0 %v710
    %953 = vmatpush.bf16.msra.mxu0 %v708
    %954 = vmatmul.bf16.gmra.mxu0 %v98
    %v955 = vpop.f32.mrf.mxu0
    %v956 = vadd.f32 %v943, %v955
    %v957 = vpop.f32.mrf.mxu0
    %958 = vdwg.mxu0
    %959 = vmatpush.bf16.msra.mxu0 %v738
    %960 = vmatpush.bf16.msra.mxu0 %v736
    %961 = vmatpush.bf16.msra.mxu0 %v734
    %962 = vmatpush.bf16.msra.mxu0 %v732
    %963 = vmatpush.bf16.msra.mxu0 %v730
    %964 = vmatpush.bf16.msra.mxu0 %v728
    %965 = vmatpush.bf16.msra.mxu0 %v726
    %966 = vmatpush.bf16.msra.mxu0 %v724
    %967 = vmatmul.bf16.gmra.mxu0 %v99
    %v968 = vpop.f32.mrf.mxu0
    %v969 = vadd.f32 %v956, %v968
    %v970 = vpop.f32.mrf.mxu0
    %971 = vdwg.mxu0
    %972 = vmatpush.bf16.msra.mxu0 %v627
    %973 = vmatpush.bf16.msra.mxu0 %v625
    %974 = vmatpush.bf16.msra.mxu0 %v623
    %975 = vmatpush.bf16.msra.mxu0 %v621
    %976 = vmatpush.bf16.msra.mxu0 %v619
    %977 = vmatpush.bf16.msra.mxu0 %v617
    %978 = vmatpush.bf16.msra.mxu0 %v615
    %979 = vmatpush.bf16.msra.mxu0 %v613
    %980 = vmatmul.bf16.gmra.mxu0 %v92
    %v981 = vpop.f32.mrf.mxu0
    %v982 = vadd.f32 0.0, %v981
    %v983 = vpop.f32.mrf.mxu0
    %984 = vdwg.mxu0
    %985 = vmatpush.bf16.msra.mxu0 %v643
    %986 = vmatpush.bf16.msra.mxu0 %v641
    %987 = vmatpush.bf16.msra.mxu0 %v639
    %988 = vmatpush.bf16.msra.mxu0 %v637
    %989 = vmatpush.bf16.msra.mxu0 %v635
    %990 = vmatpush.bf16.msra.mxu0 %v633
    %991 = vmatpush.bf16.msra.mxu0 %v631
    %992 = vmatpush.bf16.msra.mxu0 %v629
    %993 = vmatmul.bf16.gmra.mxu0 %v93
    %v994 = vpop.f32.mrf.mxu0
    %v995 = vadd.f32 %v982, %v994
    %v996 = vpop.f32.mrf.mxu0
    %997 = vdwg.mxu0
    %998 = vmatpush.bf16.msra.mxu0 %v659
    %999 = vmatpush.bf16.msra.mxu0 %v657
    %1000 = vmatpush.bf16.msra.mxu0 %v655
    %1001 = vmatpush.bf16.msra.mxu0 %v653
    %1002 = vmatpush.bf16.msra.mxu0 %v651
    %1003 = vmatpush.bf16.msra.mxu0 %v649
    %1004 = vmatpush.bf16.msra.mxu0 %v647
    %1005 = vmatpush.bf16.msra.mxu0 %v645
    %1006 = vmatmul.bf16.gmra.mxu0 %v94
    %v1007 = vpop.f32.mrf.mxu0
    %v1008 = vadd.f32 %v995, %v1007
    %v1009 = vpop.f32.mrf.mxu0
    %1010 = vdwg.mxu0
    %1011 = vmatpush.bf16.msra.mxu0 %v675
    %1012 = vmatpush.bf16.msra.mxu0 %v673
    %1013 = vmatpush.bf16.msra.mxu0 %v671
    %1014 = vmatpush.bf16.msra.mxu0 %v669
    %1015 = vmatpush.bf16.msra.mxu0 %v667
    %1016 = vmatpush.bf16.msra.mxu0 %v665
    %1017 = vmatpush.bf16.msra.mxu0 %v663
    %1018 = vmatpush.bf16.msra.mxu0 %v661
    %1019 = vmatmul.bf16.gmra.mxu0 %v95
    %v1020 = vpop.f32.mrf.mxu0
    %v1021 = vadd.f32 %v1008, %v1020
    %v1022 = vpop.f32.mrf.mxu0
    %1023 = vdwg.mxu0
    %1024 = vmatpush.bf16.msra.mxu0 %v691
    %1025 = vmatpush.bf16.msra.mxu0 %v689
    %1026 = vmatpush.bf16.msra.mxu0 %v687
    %1027 = vmatpush.bf16.msra.mxu0 %v685
    %1028 = vmatpush.bf16.msra.mxu0 %v683
    %1029 = vmatpush.bf16.msra.mxu0 %v681
    %1030 = vmatpush.bf16.msra.mxu0 %v679
    %1031 = vmatpush.bf16.msra.mxu0 %v677
    %1032 = vmatmul.bf16.gmra.mxu0 %v96
    %v1033 = vpop.f32.mrf.mxu0
    %v1034 = vadd.f32 %v1021, %v1033
    %v1035 = vpop.f32.mrf.mxu0
    %1036 = vdwg.mxu0
    %1037 = vmatpush.bf16.msra.mxu0 %v707
    %1038 = vmatpush.bf16.msra.mxu0 %v705
    %1039 = vmatpush.bf16.msra.mxu0 %v703
    %1040 = vmatpush.bf16.msra.mxu0 %v701
    %1041 = vmatpush.bf16.msra.mxu0 %v699
    %1042 = vmatpush.bf16.msra.mxu0 %v697
    %1043 = vmatpush.bf16.msra.mxu0 %v695
    %1044 = vmatpush.bf16.msra.mxu0 %v693
    %1045 = vmatmul.bf16.gmra.mxu0 %v97
    %v1046 = vpop.f32.mrf.mxu0
    %v1047 = vadd.f32 %v1034, %v1046
    %v1048 = vpop.f32.mrf.mxu0
    %1049 = vdwg.mxu0
    %1050 = vmatpush.bf16.msra.mxu0 %v723
    %1051 = vmatpush.bf16.msra.mxu0 %v721
    %1052 = vmatpush.bf16.msra.mxu0 %v719
    %1053 = vmatpush.bf16.msra.mxu0 %v717
    %1054 = vmatpush.bf16.msra.mxu0 %v715
    %1055 = vmatpush.bf16.msra.mxu0 %v713
    %1056 = vmatpush.bf16.msra.mxu0 %v711
    %1057 = vmatpush.bf16.msra.mxu0 %v709
    %1058 = vmatmul.bf16.gmra.mxu0 %v98
    %v1059 = vpop.f32.mrf.mxu0
    %v1060 = vadd.f32 %v1047, %v1059
    %v1061 = vpop.f32.mrf.mxu0
    %1062 = vdwg.mxu0
    %1063 = vmatpush.bf16.msra.mxu0 %v739
    %1064 = vmatpush.bf16.msra.mxu0 %v737
    %1065 = vmatpush.bf16.msra.mxu0 %v735
    %1066 = vmatpush.bf16.msra.mxu0 %v733
    %1067 = vmatpush.bf16.msra.mxu0 %v731
    %1068 = vmatpush.bf16.msra.mxu0 %v729
    %1069 = vmatpush.bf16.msra.mxu0 %v727
    %1070 = vmatpush.bf16.msra.mxu0 %v725
    %1071 = vmatmul.bf16.gmra.mxu0 %v99
    %v1072 = vpop.f32.mrf.mxu0
    %v1073 = vadd.f32 %v1060, %v1072
    %v1074 = vpop.f32.mrf.mxu0
    %1075 = vdwg.mxu0
    %v1076 = vadd.f32 %v43, %v969
    %v1077 = vadd.f32 %v44, %v1073
    %1078 = vst [vmem:[#allocation2] sm:$0xff] %v1076
    %1079 = vst [vmem:[#allocation2 + $0x8] sm:$0xff] %v1077
    // Predicated region
    $region30: #{tpu_custom_call.1} parent=1 // pred_check
      %p1080 = pneg %p37
    $region31: #{tpu_custom_call.1} parent=1 // pred_check_branch
      %1082 = sbr.rel (%p1080) target = $region33
    $region32: #{tpu_custom_call.1} parent=1 // pred_region
      %v1083 = vld [vmem:[#allocation2] sm:$0xff]
      %v1084 = vld [vmem:[#allocation2 + $0x8] sm:$0xff]
      %v1085 = vld [vmem:[%s2] sm:$0x3]
      %v1087 = vperm.slane %v1085, 0
      %v1088 = vperm.slane %v1085, 1
      %v1091 = vadd.f32 %v1083, %v1087
      %v1092 = vadd.f32 %v1084, %v1088
      %v1093 = vmax.f32 %v1091, 0.0
      %v1094 = vmax.f32 %v1092, 0.0
      %v1095 = vpack.c.bf16 %v1093, %v1093
      %v1096 = vpack.c.bf16 %v1094, %v1094
      %v1097 = vld [vmem:[%s3] sm:$0xf]
      %v1098 = vld [vmem:[%s3 + $0x4] sm:$0xf]
      %v1099 = vld [vmem:[%s3 + $0x8] sm:$0xf]
      %v1100 = vld [vmem:[%s3 + $0xc] sm:$0xf]
      %v1101 = vld [vmem:[%s3 + $0x10] sm:$0xf]
      %v1102 = vld [vmem:[%s3 + $0x14] sm:$0xf]
      %v1103 = vld [vmem:[%s3 + $0x18] sm:$0xf]
      %v1104 = vld [vmem:[%s3 + $0x1c] sm:$0xf]
      %v1105 = vld [vmem:[%s3 + $0x20] sm:$0xf]
      %v1106 = vld [vmem:[%s3 + $0x24] sm:$0xf]
      %v1107 = vld [vmem:[%s3 + $0x28] sm:$0xf]
      %v1108 = vld [vmem:[%s3 + $0x2c] sm:$0xf]
      %v1109 = vld [vmem:[%s3 + $0x30] sm:$0xf]
      %v1110 = vld [vmem:[%s3 + $0x34] sm:$0xf]
      %v1111 = vld [vmem:[%s3 + $0x38] sm:$0xf]
      %v1112 = vld [vmem:[%s3 + $0x3c] sm:$0xf]
      %v1113 = vld [vmem:[%s3 + $0x40] sm:$0xf]
      %v1114 = vld [vmem:[%s3 + $0x44] sm:$0xf]
      %v1115 = vld [vmem:[%s3 + $0x48] sm:$0xf]
      %v1116 = vld [vmem:[%s3 + $0x4c] sm:$0xf]
      %v1117 = vld [vmem:[%s3 + $0x50] sm:$0xf]
      %v1118 = vld [vmem:[%s3 + $0x54] sm:$0xf]
      %v1119 = vld [vmem:[%s3 + $0x58] sm:$0xf]
      %v1120 = vld [vmem:[%s3 + $0x5c] sm:$0xf]
      %v1121 = vld [vmem:[%s3 + $0x60] sm:$0xf]
      %v1122 = vld [vmem:[%s3 + $0x64] sm:$0xf]
      %v1123 = vld [vmem:[%s3 + $0x68] sm:$0xf]
      %v1124 = vld [vmem:[%s3 + $0x6c] sm:$0xf]
      %v1125 = vld [vmem:[%s3 + $0x70] sm:$0xf]
      %v1126 = vld [vmem:[%s3 + $0x74] sm:$0xf]
      %v1127 = vld [vmem:[%s3 + $0x78] sm:$0xf]
      %v1128 = vld [vmem:[%s3 + $0x7c] sm:$0xf]
      %v1129 = vld [vmem:[%s4] sm:$0x1]
      %v1131 = vperm.slane %v1129, 0
      %v1165 = vunpack.c.l.b16 %v1097
      %v1166 = vunpack.c.l.b16 %v1098
      %v1167 = vunpack.c.l.b16 %v1099
      %v1168 = vunpack.c.l.b16 %v1100
      %v1169 = vunpack.c.l.b16 %v1101
      %v1170 = vunpack.c.l.b16 %v1102
      %v1171 = vunpack.c.l.b16 %v1103
      %v1172 = vunpack.c.l.b16 %v1104
      %v1173 = vunpack.c.l.b16 %v1105
      %v1174 = vunpack.c.l.b16 %v1106
      %v1175 = vunpack.c.l.b16 %v1107
      %v1176 = vunpack.c.l.b16 %v1108
      %v1177 = vunpack.c.l.b16 %v1109
      %v1178 = vunpack.c.l.b16 %v1110
      %v1179 = vunpack.c.l.b16 %v1111
      %v1180 = vunpack.c.l.b16 %v1112
      %v1181 = vunpack.c.l.b16 %v1113
      %v1182 = vunpack.c.l.b16 %v1114
      %v1183 = vunpack.c.l.b16 %v1115
      %v1184 = vunpack.c.l.b16 %v1116
      %v1185 = vunpack.c.l.b16 %v1117
      %v1186 = vunpack.c.l.b16 %v1118
      %v1187 = vunpack.c.l.b16 %v1119
      %v1188 = vunpack.c.l.b16 %v1120
      %v1189 = vunpack.c.l.b16 %v1121
      %v1190 = vunpack.c.l.b16 %v1122
      %v1191 = vunpack.c.l.b16 %v1123
      %v1192 = vunpack.c.l.b16 %v1124
      %v1193 = vunpack.c.l.b16 %v1125
      %v1194 = vunpack.c.l.b16 %v1126
      %v1195 = vunpack.c.l.b16 %v1127
      %v1196 = vunpack.c.l.b16 %v1128
      %v1197 = vpack.c.b16 %v1166, %v1165
      %v1198 = vpack.c.b16 %v1168, %v1167
      %v1199 = vpack.c.b16 %v1170, %v1169
      %v1200 = vpack.c.b16 %v1172, %v1171
      %v1201 = vpack.c.b16 %v1174, %v1173
      %v1202 = vpack.c.b16 %v1176, %v1175
      %v1203 = vpack.c.b16 %v1178, %v1177
      %v1204 = vpack.c.b16 %v1180, %v1179
      %v1205 = vpack.c.b16 %v1182, %v1181
      %v1206 = vpack.c.b16 %v1184, %v1183
      %v1207 = vpack.c.b16 %v1186, %v1185
      %v1208 = vpack.c.b16 %v1188, %v1187
      %v1209 = vpack.c.b16 %v1190, %v1189
      %v1210 = vpack.c.b16 %v1192, %v1191
      %v1211 = vpack.c.b16 %v1194, %v1193
      %v1212 = vpack.c.b16 %v1196, %v1195
      %1229 = vmatpush.bf16.msra.mxu0 %v1204
      %1230 = vmatpush.bf16.msra.mxu0 %v1203
      %1231 = vmatpush.bf16.msra.mxu0 %v1202
      %1232 = vmatpush.bf16.msra.mxu0 %v1201
      %1233 = vmatpush.bf16.msra.mxu0 %v1200
      %1234 = vmatpush.bf16.msra.mxu0 %v1199
      %1235 = vmatpush.bf16.msra.mxu0 %v1198
      %1236 = vmatpush.bf16.msra.mxu0 %v1197
      %1237 = vmatmul.bf16.gmra.mxu0 %v1095
      %v1238 = vpop.f32.mrf.mxu0
      %v1239 = vadd.f32 %v1131, %v1238
      %v1240 = vpop.f32.mrf.mxu0
      %1241 = vdwg.mxu0
      %1242 = vmatpush.bf16.msra.mxu0 %v1212
      %1243 = vmatpush.bf16.msra.mxu0 %v1211
      %1244 = vmatpush.bf16.msra.mxu0 %v1210
      %1245 = vmatpush.bf16.msra.mxu0 %v1209
      %1246 = vmatpush.bf16.msra.mxu0 %v1208
      %1247 = vmatpush.bf16.msra.mxu0 %v1207
      %1248 = vmatpush.bf16.msra.mxu0 %v1206
      %1249 = vmatpush.bf16.msra.mxu0 %v1205
      %1250 = vmatmul.bf16.gmra.mxu0 %v1096
      %v1251 = vpop.f32.mrf.mxu0
      %v1252 = vadd.f32 %v1239, %v1251
      %v1253 = vpop.f32.mrf.mxu0
      %1254 = vdwg.mxu0
      %vm1255 = vcmask 261120
      %1256 = vst.msk [vmem:[#allocation6] sm:$0xff] %vm1255, %v1252
    $region33: #{tpu_custom_call.1} parent=1 // pred_fallthru
      _
    // Predicated region
    $region34: #{tpu_custom_call.1} parent=1 // pred_check
      _
    $region35: #{tpu_custom_call.1} parent=1 // pred_check_branch
      %1258 = sbr.rel (0) target = $region37
    $region36: #{tpu_custom_call.1} parent=1 // pred_region
      %1260 = vsyncadd [#allocation5], 96
      %s1261 = sshll.u32 [#allocation6], 4
      %s1262 = int_to_ptr.vmem [resolvable:$true] %s1261
      %s1263 = sshll.u32 %s5, 4
      %s1264 = int_to_ptr.hbm [resolvable:$true] %s1263
      %1269 = dma.vmem_to_hbm [thread:$0]  %s1262, 32, %s1264, [#allocation5], 32, 32, 2
    $region37: #{tpu_custom_call.1} parent=1 // pred_fallthru
      _
    // Predicated region
    $region38: #{tpu_custom_call.1} parent=1 // pred_check
      _
    $region39: #{tpu_custom_call.1} parent=1 // pred_check_branch
      %1271 = sbr.rel (0) target = $region41
    $region40: #{tpu_custom_call.1} parent=1 // pred_region
      %1273 = dma.done [#allocation5], 128
    $region41: #{tpu_custom_call.1} parent=1 // pred_fallthru
      _
    %1274 = vsyncpa [#allocation4], 1
    %1275 = vsyncpa [#allocation5], 1

</llo_original>
